<compile_context>
chip_gen: v7x
topology: tpu7x:2x2x1
jax: 0.10.0
libtpu: 0.0.40
codegen_flags: <defaults>
</compile_context>

<pallas_src>
import functools

import jax
import jax.numpy as jnp
from jax.experimental import pallas as pl
from jax.experimental.pallas import tpu as pltpu

NEG_SLOPE = 0.2      # LeakyReLU slope used as `activation`
LANE = 128           # TPU lane width
SUBLANE = 16         # bf16 sublane packing (also fine for f32 rows)


def _round_up(x, m):
    return (x + m - 1) // m * m


def _cdiv(a, b):
    return -(-a // b)


def _leaky_relu(h):
    return jnp.where(h > 0, h, NEG_SLOPE * h)


def _critic_kernel(n_hidden, lane_dense_out, x_ref, *refs):
    """Fused MLP forward over one batch tile.

    refs = (w_in, b_in, [w_h0, b_h0, ...], w_out_row, out_ref)
      weights : bf16, (in, out_pad)  (pre-transposed, h @ W)
      biases  : f32,  (1, out_pad)
      w_out_row: f32, (1, H_last_pad)
    """
    out_ref = refs[-1]
    p = refs[:-1]

    # Input layer: cast the f32 x tile to bf16 *inside* the kernel (HBM stream
    # stays unpadded f32), MXU matmul with f32 accumulation, bias + LeakyReLU
    # on the f32 accumulator (safe on v5e's non-bf16 VPU).
    h = jnp.dot(x_ref[...].astype(jnp.bfloat16), p[0][...],
                preferred_element_type=jnp.float32)
    h = _leaky_relu(h + p[1][...])

    # Hidden layers.  BatchNorm1d modules exist in the PyTorch module but are
    # never applied in forward(), so they are intentionally omitted here.
    for layer in range(n_hidden):
        w = p[2 + 2 * layer]
        b = p[3 + 2 * layer]
        h = jnp.dot(h.astype(w.dtype), w[...], preferred_element_type=jnp.float32)
        h = _leaky_relu(h + b[...])

    # Output layer (H -> 1, no bias): an N=1 MXU matmul would light up 1 lane
    # and pay the result-FIFO drain, so do a VPU multiply + lane reduction.
    r = jnp.sum(h * p[-1][...], axis=-1)              # (TB,)
    if lane_dense_out:
        out_ref[...] = r[None, :]                     # (1, TB) lane-dense row
    else:
        out_ref[...] = jnp.sum(h * p[-1][...], axis=-1, keepdims=True)  # (TB, 1)


def prepare_critic_params(params):
    """One-time parameter prep (hoisted out of the forward; cache the result).

    params = (w_in, b_in, [(w_h, b_h), ...], w_out); weights stored (in, out).
    Pads layer OUTPUT dims to lane multiples, keeps the input feature dim
    unpadded (x streams straight from HBM), and casts matmul weights to bf16.
    Zero-padding is correctness-neutral (padded weight cols / bias entries are
    zero; LeakyReLU(0) == 0), so padded features contribute nothing downstream.
    """
    w_in, b_in, hidden, w_out = params
    D = w_in.shape[0]
    dims = [D, w_in.shape[1]] + [w_h.shape[1] for w_h, _ in hidden]
    dims_pad = [D] + [_round_up(d, LANE) for d in dims[1:]]

    def pad2(a, rows, cols):
        return jnp.pad(a, ((0, rows - a.shape[0]), (0, cols - a.shape[1])))

    flat = [
        pad2(w_in, dims_pad[0], dims_pad[1]).astype(jnp.bfloat16),
        pad2(b_in, 1, dims_pad[1]).astype(jnp.float32),
    ]
    for li, (w_h, b_h) in enumerate(hidden):
        flat.append(pad2(w_h, dims_pad[1 + li], dims_pad[2 + li]).astype(jnp.bfloat16))
        flat.append(pad2(b_h, 1, dims_pad[2 + li]).astype(jnp.float32))
    # Output weight as a lane-aligned row for the VPU reduction.
    flat.append(pad2(w_out.T, 1, dims_pad[-1]).astype(jnp.float32))

    return {"flat": flat, "dims_pad": dims_pad, "n_hidden": len(hidden)}


def _vmem_capacity_bytes():
    try:
        return int(pltpu.get_tpu_info().vmem_capacity_bytes)
    except Exception:
        return 64 << 20   # conservative (v7x-sized) fallback


_FAST_PIPELINE_OK = True  # flipped off once if Buffered(1)/lane-dense are rejected


def critic_forward(x, prepared, *, max_batch_tile=4096):
    global _FAST_PIPELINE_OK
    flat = prepared["flat"]
    dims_pad = prepared["dims_pad"]
    n_hidden = prepared["n_hidden"]

    B, D = x.shape
    assert D == dims_pad[0], "input feature dim mismatch with prepared params"

    vmem_cap = _vmem_capacity_bytes()
    param_bytes = sum(a.size * a.dtype.itemsize for a in flat)
    max_w = max(dims_pad[1:])

    # Cap the batch tile so double-buffered x tiles + f32/bf16 activations +
    # the output row stay well inside VMEM (v7x: 64 MiB; v5e/v6e: 128 MiB),
    # even if params end up double-buffered on the fallback path.
    per_row_bytes = 2 * 4 * D + 4 * max_w + 2 * max_w + 2 * 4
    budget = int(0.5 * vmem_cap) - 2 * param_bytes - (4 << 20)
    if budget > 0:
        tile_cap = max(LANE, budget // per_row_bytes // LANE * LANE)
        max_batch_tile = min(max_batch_tile, tile_cap)

    # Tile-count balancing (never pad up to a nearly-whole wasted tile) and
    # >= 2 tiles for large batches so the "parallel" grid axis feeds both
    # TensorCores on v7x (costs one extra ~0.35 us step on single-TC chips).
    num_tiles = max(1, _cdiv(B, max_batch_tile))
    if num_tiles == 1 and B >= 2048:
        num_tiles = 2
    if num_tiles == 1:
        TB = _round_up(B, SUBLANE)
    else:
        TB = _round_up(_cdiv(B, num_tiles), LANE)   # lane-aligned tiles
    B_pad = num_tiles * TB

    # x stays f32 and column-unpadded (only streamed operand -> ~4 B/elt HBM).
    # Only the batch dim is (cheaply) row-padded when needed.
    x_in = x.astype(jnp.float32)
    if B_pad != B:
        x_in = jnp.pad(x_in, ((0, B_pad - B), (0, 0)))

    flops = 2 * B_pad * sum(di * do for di, do in zip(dims_pad[:-1], dims_pad[1:]))
    flops += 2 * B_pad * dims_pad[-1]   # final VPU dot-row
    bytes_accessed = B_pad * D * 4 + param_bytes + B_pad * 4
    cost = pl.CostEstimate(flops=int(flops), transcendentals=0,
                           bytes_accessed=int(bytes_accessed))

    def run(fast):
        x_spec = pl.BlockSpec((TB, D), lambda i: (i, 0))

        # Grid-invariant params: constant index maps keep them VMEM-resident;
        # on the fast path also single-buffer them (no point double-buffering
        # operands that never change across grid steps).
        param_specs = []
        for a in flat:
            zero_map = (lambda i, r=a.ndim: (0,) * r)   # default-arg bind
            if fast:
                param_specs.append(
                    pl.BlockSpec(a.shape, zero_map, pipeline_mode=pl.Buffered(1)))
            else:
                param_specs.append(pl.BlockSpec(a.shape, zero_map))

        if fast:
            # Lane-dense output: one (1, TB) row per tile.
            out_shape = jax.ShapeDtypeStruct((1, B_pad), jnp.float32)
            out_spec = pl.BlockSpec((1, TB), lambda i: (0, i))
        else:
            out_shape = jax.ShapeDtypeStruct((B_pad, 1), jnp.float32)
            out_spec = pl.BlockSpec((TB, 1), lambda i: (i, 0))

        param_resident = (1 if fast else 2) * param_bytes
        need = (param_resident + 2 * TB * D * 4 + 2 * TB * 4
                + 3 * TB * max_w * 4 + (8 << 20))
        vmem_limit = int(min(max(need, 32 << 20), int(0.78 * vmem_cap)))

        kernel = functools.partial(_critic_kernel, n_hidden, fast)
        out = pl.pallas_call(
            kernel,
            out_shape=out_shape,
            grid_spec=pltpu.PrefetchScalarGridSpec(
                num_scalar_prefetch=0,
                grid=(num_tiles,),
                in_specs=[x_spec] + param_specs,
                out_specs=out_spec,
            ),
            compiler_params=pltpu.CompilerParams(
                dimension_semantics=("parallel",),   # batch axis -> both TCs on v7x
                vmem_limit_bytes=vmem_limit,
            ),
            cost_estimate=cost,
        )(x_in, *flat)

        if fast:
            return out[0, :B][:, None]
        return out[:B]

    if _FAST_PIPELINE_OK:
        try:
            return run(fast=True)
        except Exception:
            # Installed JAX/Mosaic rejected Buffered(1) single-buffering or the
            # lane-dense output relayout; fall back to the verified layout once.
            _FAST_PIPELINE_OK = False
    return run(fast=False)


def init_critic_params(key, input_dim, n_neurons):
    """nn.Linear-style init (U[-1/sqrt(fan_in), 1/sqrt(fan_in)]); weights (in, out)."""
    def linear(key, fan_in, fan_out, bias=True):
        kw, kb = jax.random.split(key)
        bound = 1.0 / jnp.sqrt(fan_in)
        w = jax.random.uniform(kw, (fan_in, fan_out), jnp.float32, -bound, bound)
        if not bias:
            return w, None
        b = jax.random.uniform(kb, (1, fan_out), jnp.float32, -bound, bound)
        return w, b

    keys = jax.random.split(key, len(n_neurons) + 1)
    w_in, b_in = linear(keys[0], input_dim, n_neurons[0])
    hidden = []
    for i in range(len(n_neurons) - 1):
        hidden.append(linear(keys[i + 1], n_neurons[i], n_neurons[i + 1]))
    w_out, _ = linear(keys[-1], n_neurons[-1], 1, bias=False)
    return w_in, b_in, hidden, w_out


def critic_forward_ref(x, params):
    """Pure-JAX reference matching the kernel numerics (bf16 matmul, f32 acc)."""
    # TODO(synk): `activation` is a constructor arg in the PyTorch module; LeakyReLU(0.2) chosen here.
    w_in, b_in, hidden, w_out = params
    h = jnp.dot(x.astype(jnp.bfloat16), w_in.astype(jnp.bfloat16),
                preferred_element_type=jnp.float32) + b_in
    h = jnp.where(h > 0, h, NEG_SLOPE * h)
    for w_h, b_h in hidden:
        h = jnp.dot(h.astype(jnp.bfloat16), w_h.astype(jnp.bfloat16),
                    preferred_element_type=jnp.float32) + b_h
        h = jnp.where(h > 0, h, NEG_SLOPE * h)
    return jnp.sum(h * w_out[:, 0][None, :], axis=-1, keepdims=True)


if __name__ == "__main__":
    # Small shapes consistent with Critic(input_dim, n_neurons, activation).
    B = 8
    input_dim = 32
    n_neurons = (64, 64)

    key = jax.random.PRNGKey(0)
    k_x, k_p = jax.random.split(key)

    x = jax.random.normal(k_x, (B, input_dim), dtype=jnp.float32)
    params = init_critic_params(k_p, input_dim, n_neurons)
    prepared = prepare_critic_params(params)   # one-time pad/cast, reused per call

    out = critic_forward(x, prepared)
    out = jax.block_until_ready(out)

    ref = critic_forward_ref(x, params)
    assert out.shape == (B, 1), f"bad shape {out.shape}"
    assert jnp.allclose(out, ref, atol=2e-3, rtol=2e-3), "mismatch vs JAX reference"

    print("KERNEL_OK")
</pallas_src>

<mosaic_0001>
module attributes {stable_mosaic.version = 11 : i64} {
  func.func @_critic_kernel(%arg0: i32, %arg1: memref<16x32xf32, #tpu.memory_space<vmem>>, %arg2: memref<32x128xbf16, #tpu.memory_space<vmem>>, %arg3: memref<1x128xf32, #tpu.memory_space<vmem>>, %arg4: memref<128x128xbf16, #tpu.memory_space<vmem>>, %arg5: memref<1x128xf32, #tpu.memory_space<vmem>>, %arg6: memref<1x128xf32, #tpu.memory_space<vmem>>, %arg7: memref<1x16xf32, #tpu.memory_space<vmem>>) attributes {dimension_semantics = [#tpu.dimension_semantics<parallel>], iteration_bounds = array<i64: 1>, scalar_prefetch = 0 : i64, scratch_operands = 0 : i64, tpu.core_type = #tpu.core_type<tc>, window_params = [{transform_indices = @transform_0, window_bounds = array<i64: 16, 32>}, {pipeline_mode = #tpu.pipeline_mode<synchronous>, transform_indices = @transform_1, window_bounds = array<i64: 32, 128>}, {pipeline_mode = #tpu.pipeline_mode<synchronous>, transform_indices = @transform_2, window_bounds = array<i64: 1, 128>}, {pipeline_mode = #tpu.pipeline_mode<synchronous>, transform_indices = @transform_3, window_bounds = array<i64: 128, 128>}, {pipeline_mode = #tpu.pipeline_mode<synchronous>, transform_indices = @transform_4, window_bounds = array<i64: 1, 128>}, {pipeline_mode = #tpu.pipeline_mode<synchronous>, transform_indices = @transform_5, window_bounds = array<i64: 1, 128>}, {transform_indices = @transform_6, window_bounds = array<i64: 1, 16>}]} {
    %c0 = arith.constant 0 : index
    %c0_0 = arith.constant 0 : index
    %0 = vector.load %arg1[%c0, %c0_0] : memref<16x32xf32, #tpu.memory_space<vmem>>, vector<16x32xf32>
    %1 = arith.truncf %0 : vector<16x32xf32> to vector<16x32xbf16>
    %c0_1 = arith.constant 0 : index
    %c0_2 = arith.constant 0 : index
    %2 = vector.load %arg2[%c0_1, %c0_2] : memref<32x128xbf16, #tpu.memory_space<vmem>>, vector<32x128xbf16>
    %cst = arith.constant dense<0.000000e+00> : vector<16x128xf32>
    %3 = tpu.matmul %1, %2, %cst {dimension_numbers = #tpu.dot_dimension_numbers<[1], [0], [0], [1], [0, 0, 1, 1], [], []>} : vector<16x32xbf16>, vector<32x128xbf16>, vector<16x128xf32> -> vector<16x128xf32>
    %c0_3 = arith.constant 0 : index
    %c0_4 = arith.constant 0 : index
    %4 = vector.load %arg3[%c0_3, %c0_4] : memref<1x128xf32, #tpu.memory_space<vmem>>, vector<1x128xf32>
    %5 = vector.broadcast %4 : vector<1x128xf32> to vector<16x128xf32>
    %6 = arith.addf %3, %5 : vector<16x128xf32>
    %cst_5 = arith.constant 0.000000e+00 : f32
    %7 = vector.broadcast %cst_5 : f32 to vector<16x128xf32>
    %8 = arith.cmpf ogt, %6, %7 : vector<16x128xf32>
    %cst_6 = arith.constant 2.000000e-01 : f32
    %9 = vector.broadcast %cst_6 : f32 to vector<16x128xf32>
    %10 = arith.mulf %9, %6 : vector<16x128xf32>
    %11 = arith.select %8, %6, %10 : vector<16x128xi1>, vector<16x128xf32>
    %12 = arith.truncf %11 : vector<16x128xf32> to vector<16x128xbf16>
    %c0_7 = arith.constant 0 : index
    %c0_8 = arith.constant 0 : index
    %13 = vector.load %arg4[%c0_7, %c0_8] : memref<128x128xbf16, #tpu.memory_space<vmem>>, vector<128x128xbf16>
    %cst_9 = arith.constant dense<0.000000e+00> : vector<16x128xf32>
    %14 = tpu.matmul %12, %13, %cst_9 {dimension_numbers = #tpu.dot_dimension_numbers<[1], [0], [0], [1], [0, 0, 1, 1], [], []>} : vector<16x128xbf16>, vector<128x128xbf16>, vector<16x128xf32> -> vector<16x128xf32>
    %c0_10 = arith.constant 0 : index
    %c0_11 = arith.constant 0 : index
    %15 = vector.load %arg5[%c0_10, %c0_11] : memref<1x128xf32, #tpu.memory_space<vmem>>, vector<1x128xf32>
    %16 = vector.broadcast %15 : vector<1x128xf32> to vector<16x128xf32>
    %17 = arith.addf %14, %16 : vector<16x128xf32>
    %cst_12 = arith.constant 0.000000e+00 : f32
    %18 = vector.broadcast %cst_12 : f32 to vector<16x128xf32>
    %19 = arith.cmpf ogt, %17, %18 : vector<16x128xf32>
    %cst_13 = arith.constant 2.000000e-01 : f32
    %20 = vector.broadcast %cst_13 : f32 to vector<16x128xf32>
    %21 = arith.mulf %20, %17 : vector<16x128xf32>
    %22 = arith.select %19, %17, %21 : vector<16x128xi1>, vector<16x128xf32>
    %c0_14 = arith.constant 0 : index
    %c0_15 = arith.constant 0 : index
    %23 = vector.load %arg6[%c0_14, %c0_15] : memref<1x128xf32, #tpu.memory_space<vmem>>, vector<1x128xf32>
    %24 = vector.broadcast %23 : vector<1x128xf32> to vector<16x128xf32>
    %25 = arith.mulf %22, %24 : vector<16x128xf32>
    %cst_16 = arith.constant dense<0.000000e+00> : vector<16xf32>
    %26 = vector.multi_reduction <add>, %25, %cst_16 [1] : vector<16x128xf32> to vector<16xf32>
    %27 = vector.shape_cast %26 : vector<16xf32> to vector<1x16xf32>
    %c0_17 = arith.constant 0 : index
    %c0_18 = arith.constant 0 : index
    %28 = vector.load %arg7[%c0_17, %c0_18] : memref<1x16xf32, #tpu.memory_space<vmem>>, vector<1x16xf32>
    tpu.vector_store %arg7[%c0_17, %c0_18], %27 {strides = array<i32>} : memref<1x16xf32, #tpu.memory_space<vmem>>, vector<1x16xf32>,
    return
  }
  func.func @transform_0(%arg0: i32) -> (i32, i32) {
    %c0_i32 = arith.constant 0 : i32
    %c0_i32_0 = arith.constant 0 : i32
    return %arg0, %c0_i32 : i32, i32
  }
  func.func @transform_1(%arg0: i32) -> (i32, i32) {
    %c0_i32 = arith.constant 0 : i32
    %c0_i32_0 = arith.constant 0 : i32
    %c0_i32_1 = arith.constant 0 : i32
    return %c0_i32, %c0_i32_0 : i32, i32
  }
  func.func @transform_2(%arg0: i32) -> (i32, i32) {
    %c0_i32 = arith.constant 0 : i32
    %c0_i32_0 = arith.constant 0 : i32
    %c0_i32_1 = arith.constant 0 : i32
    return %c0_i32, %c0_i32_0 : i32, i32
  }
  func.func @transform_3(%arg0: i32) -> (i32, i32) {
    %c0_i32 = arith.constant 0 : i32
    %c0_i32_0 = arith.constant 0 : i32
    %c0_i32_1 = arith.constant 0 : i32
    return %c0_i32, %c0_i32_0 : i32, i32
  }
  func.func @transform_4(%arg0: i32) -> (i32, i32) {
    %c0_i32 = arith.constant 0 : i32
    %c0_i32_0 = arith.constant 0 : i32
    %c0_i32_1 = arith.constant 0 : i32
    return %c0_i32, %c0_i32_0 : i32, i32
  }
  func.func @transform_5(%arg0: i32) -> (i32, i32) {
    %c0_i32 = arith.constant 0 : i32
    %c0_i32_0 = arith.constant 0 : i32
    %c0_i32_1 = arith.constant 0 : i32
    return %c0_i32, %c0_i32_0 : i32, i32
  }
  func.func @transform_6(%arg0: i32) -> (i32, i32) {
    %c0_i32 = arith.constant 0 : i32
    %c0_i32_0 = arith.constant 0 : i32
    return %c0_i32, %arg0 : i32, i32
  }
}

module attributes {stable_mosaic.version = 11 : i64} {
  func.func @_critic_kernel(%arg0: i32, %arg1: memref<16x32xf32, #tpu.memory_space<vmem>>, %arg2: memref<32x128xbf16, #tpu.memory_space<vmem>>, %arg3: memref<1x128xf32, #tpu.memory_space<vmem>>, %arg4: memref<128x128xbf16, #tpu.memory_space<vmem>>, %arg5: memref<1x128xf32, #tpu.memory_space<vmem>>, %arg6: memref<1x128xf32, #tpu.memory_space<vmem>>, %arg7: memref<16x1xf32, #tpu.memory_space<vmem>>) attributes {dimension_semantics = [#tpu.dimension_semantics<parallel>], iteration_bounds = array<i64: 1>, scalar_prefetch = 0 : i64, scratch_operands = 0 : i64, tpu.core_type = #tpu.core_type<tc>, window_params = [{transform_indices = @transform_0, window_bounds = array<i64: 16, 32>}, {pipeline_mode = #tpu.pipeline_mode<synchronous>, transform_indices = @transform_1, window_bounds = array<i64: 32, 128>}, {pipeline_mode = #tpu.pipeline_mode<synchronous>, transform_indices = @transform_2, window_bounds = array<i64: 1, 128>}, {pipeline_mode = #tpu.pipeline_mode<synchronous>, transform_indices = @transform_3, window_bounds = array<i64: 128, 128>}, {pipeline_mode = #tpu.pipeline_mode<synchronous>, transform_indices = @transform_4, window_bounds = array<i64: 1, 128>}, {pipeline_mode = #tpu.pipeline_mode<synchronous>, transform_indices = @transform_5, window_bounds = array<i64: 1, 128>}, {transform_indices = @transform_6, window_bounds = array<i64: 16, 1>}]} {
    %c0 = arith.constant 0 : index
    %c0_0 = arith.constant 0 : index
    %0 = vector.load %arg1[%c0, %c0_0] : memref<16x32xf32, #tpu.memory_space<vmem>>, vector<16x32xf32>
    %1 = arith.truncf %0 : vector<16x32xf32> to vector<16x32xbf16>
    %c0_1 = arith.constant 0 : index
    %c0_2 = arith.constant 0 : index
    %2 = vector.load %arg2[%c0_1, %c0_2] : memref<32x128xbf16, #tpu.memory_space<vmem>>, vector<32x128xbf16>
    %cst = arith.constant dense<0.000000e+00> : vector<16x128xf32>
    %3 = tpu.matmul %1, %2, %cst {dimension_numbers = #tpu.dot_dimension_numbers<[1], [0], [0], [1], [0, 0, 1, 1], [], []>} : vector<16x32xbf16>, vector<32x128xbf16>, vector<16x128xf32> -> vector<16x128xf32>
    %c0_3 = arith.constant 0 : index
    %c0_4 = arith.constant 0 : index
    %4 = vector.load %arg3[%c0_3, %c0_4] : memref<1x128xf32, #tpu.memory_space<vmem>>, vector<1x128xf32>
    %5 = vector.broadcast %4 : vector<1x128xf32> to vector<16x128xf32>
    %6 = arith.addf %3, %5 : vector<16x128xf32>
    %cst_5 = arith.constant 0.000000e+00 : f32
    %7 = vector.broadcast %cst_5 : f32 to vector<16x128xf32>
    %8 = arith.cmpf ogt, %6, %7 : vector<16x128xf32>
    %cst_6 = arith.constant 2.000000e-01 : f32
    %9 = vector.broadcast %cst_6 : f32 to vector<16x128xf32>
    %10 = arith.mulf %9, %6 : vector<16x128xf32>
    %11 = arith.select %8, %6, %10 : vector<16x128xi1>, vector<16x128xf32>
    %12 = arith.truncf %11 : vector<16x128xf32> to vector<16x128xbf16>
    %c0_7 = arith.constant 0 : index
    %c0_8 = arith.constant 0 : index
    %13 = vector.load %arg4[%c0_7, %c0_8] : memref<128x128xbf16, #tpu.memory_space<vmem>>, vector<128x128xbf16>
    %cst_9 = arith.constant dense<0.000000e+00> : vector<16x128xf32>
    %14 = tpu.matmul %12, %13, %cst_9 {dimension_numbers = #tpu.dot_dimension_numbers<[1], [0], [0], [1], [0, 0, 1, 1], [], []>} : vector<16x128xbf16>, vector<128x128xbf16>, vector<16x128xf32> -> vector<16x128xf32>
    %c0_10 = arith.constant 0 : index
    %c0_11 = arith.constant 0 : index
    %15 = vector.load %arg5[%c0_10, %c0_11] : memref<1x128xf32, #tpu.memory_space<vmem>>, vector<1x128xf32>
    %16 = vector.broadcast %15 : vector<1x128xf32> to vector<16x128xf32>
    %17 = arith.addf %14, %16 : vector<16x128xf32>
    %cst_12 = arith.constant 0.000000e+00 : f32
    %18 = vector.broadcast %cst_12 : f32 to vector<16x128xf32>
    %19 = arith.cmpf ogt, %17, %18 : vector<16x128xf32>
    %cst_13 = arith.constant 2.000000e-01 : f32
    %20 = vector.broadcast %cst_13 : f32 to vector<16x128xf32>
    %21 = arith.mulf %20, %17 : vector<16x128xf32>
    %22 = arith.select %19, %17, %21 : vector<16x128xi1>, vector<16x128xf32>
    %c0_14 = arith.constant 0 : index
    %c0_15 = arith.constant 0 : index
    %23 = vector.load %arg6[%c0_14, %c0_15] : memref<1x128xf32, #tpu.memory_space<vmem>>, vector<1x128xf32>
    %24 = vector.broadcast %23 : vector<1x128xf32> to vector<16x128xf32>
    %25 = arith.mulf %22, %24 : vector<16x128xf32>
    %cst_16 = arith.constant dense<0.000000e+00> : vector<16xf32>
    %26 = vector.multi_reduction <add>, %25, %cst_16 [1] : vector<16x128xf32> to vector<16xf32>
    %27 = vector.shape_cast %26 : vector<16xf32> to vector<16x1xf32>
    %c0_17 = arith.constant 0 : index
    %c0_18 = arith.constant 0 : index
    %28 = vector.load %arg7[%c0_17, %c0_18] : memref<16x1xf32, #tpu.memory_space<vmem>>, vector<16x1xf32>
    tpu.vector_store %arg7[%c0_17, %c0_18], %27 {strides = array<i32>} : memref<16x1xf32, #tpu.memory_space<vmem>>, vector<16x1xf32>,
    return
  }
  func.func @transform_0(%arg0: i32) -> (i32, i32) {
    %c0_i32 = arith.constant 0 : i32
    %c0_i32_0 = arith.constant 0 : i32
    return %arg0, %c0_i32 : i32, i32
  }
  func.func @transform_1(%arg0: i32) -> (i32, i32) {
    %c0_i32 = arith.constant 0 : i32
    %c0_i32_0 = arith.constant 0 : i32
    %c0_i32_1 = arith.constant 0 : i32
    return %c0_i32, %c0_i32_0 : i32, i32
  }
  func.func @transform_2(%arg0: i32) -> (i32, i32) {
    %c0_i32 = arith.constant 0 : i32
    %c0_i32_0 = arith.constant 0 : i32
    %c0_i32_1 = arith.constant 0 : i32
    return %c0_i32, %c0_i32_0 : i32, i32
  }
  func.func @transform_3(%arg0: i32) -> (i32, i32) {
    %c0_i32 = arith.constant 0 : i32
    %c0_i32_0 = arith.constant 0 : i32
    %c0_i32_1 = arith.constant 0 : i32
    return %c0_i32, %c0_i32_0 : i32, i32
  }
  func.func @transform_4(%arg0: i32) -> (i32, i32) {
    %c0_i32 = arith.constant 0 : i32
    %c0_i32_0 = arith.constant 0 : i32
    %c0_i32_1 = arith.constant 0 : i32
    return %c0_i32, %c0_i32_0 : i32, i32
  }
  func.func @transform_5(%arg0: i32) -> (i32, i32) {
    %c0_i32 = arith.constant 0 : i32
    %c0_i32_0 = arith.constant 0 : i32
    %c0_i32_1 = arith.constant 0 : i32
    return %c0_i32, %c0_i32_0 : i32, i32
  }
  func.func @transform_6(%arg0: i32) -> (i32, i32) {
    %c0_i32 = arith.constant 0 : i32
    %c0_i32_0 = arith.constant 0 : i32
    return %arg0, %c0_i32 : i32, i32
  }
}

</mosaic_0001>

<llo_original>
// kernel: tpu_custom_call.1
$region0: #{tpu_custom_call.1}
  #allocation0 [shape = 'u32[]', space=smem, size = 0x4, offset = 0x4, fixed_abs, tag = 'smem constant byte address 0x4 - core index']
  #allocation1 [shape = 'u32[144,128]{1,0:T(1,128)}', space=vmem, size = 0x12000, scoped, tag = 'internal scratch']
  %s0 = inlined_call_operand.hbm [shape: f32[16,32], index: 0, kind: input, shape index: {}]
  %s1 = inlined_call_operand.hbm [shape: bf16[32,128], index: 1, kind: input, shape index: {}]
  %s2 = inlined_call_operand.vmem [shape: f32[1,128], index: 2, kind: input, shape index: {}]
  %s3 = inlined_call_operand.hbm [shape: bf16[128,128], index: 3, kind: input, shape index: {}]
  %s4 = inlined_call_operand.vmem [shape: f32[1,128], index: 4, kind: input, shape index: {}]
  %s5 = inlined_call_operand.vmem [shape: f32[1,128], index: 5, kind: input, shape index: {}]
  %s6 = inlined_call_operand.hbm [shape: f32[1,16], index: 6, kind: output, shape index: {}]
  %s7 = sld [smem:[#allocation0]]
  $region46: #{tpu_custom_call.1} parent=0
    _
  %s9 = ssub.s32 1, %s7
  %s10 = scalar_select 0, %s9, %s7
  $region1: #{tpu_custom_call.1} parent=0
    #allocation2 [shape = 'u8[8192]{0}', space=vmem, size = 0x2000, scoped, tag = 'input window, operand 0, single buffered']
    #allocation3 [shape = 's32[1]{0}', space=sflag, size = 0x4, scoped, tag = 'scoped memory for tpu_custom_call.1']
    #allocation4 [shape = 's32[1]{0}', space=sflag, size = 0x4, scoped, tag = 'scoped memory for tpu_custom_call.1']
    #allocation5 [shape = 'u8[8192]{0}', space=vmem, size = 0x2000, scoped, tag = 'input window, operand 1, single buffered']
    #allocation6 [shape = 's32[1]{0}', space=sflag, size = 0x4, scoped, tag = 'scoped memory for tpu_custom_call.1']
    #allocation7 [shape = 'u8[32768]{0}', space=vmem, size = 0x8000, scoped, tag = 'input window, operand 3, single buffered']
    #allocation8 [shape = 'u8[512]{0}', space=vmem, size = 0x400, scoped, tag = 'output window, operand 0, single buffered']
    %11 = vsyncpa [#allocation3], 0
    %12 = vsyncpa [#allocation6], 0
    %13 = vsyncpa [#allocation4], 0
    // Predicated region
    $region2: #{tpu_custom_call.1} parent=1 // pred_check
      _
    $region3: #{tpu_custom_call.1} parent=1 // pred_check_branch
      %15 = sbr.rel (0) target = $region5
    $region4: #{tpu_custom_call.1} parent=1 // pred_region
      %s17 = ssub.s32 256, 256
      %18 = vsyncadd [#allocation3], %s17
      %s19 = sshll.u32 [#allocation2], 4
      %s20 = int_to_ptr.vmem [resolvable:$true] %s19
      %25 = dma.hbm_to_vmem [thread:$0]  %s0, 256, %s20, [#allocation3], 128, 128, 8
    $region5: #{tpu_custom_call.1} parent=1 // pred_fallthru
      _
    // Predicated region
    $region6: #{tpu_custom_call.1} parent=1 // pred_check
      _
    $region7: #{tpu_custom_call.1} parent=1 // pred_check_branch
      %27 = sbr.rel (0) target = $region9
    $region8: #{tpu_custom_call.1} parent=1 // pred_region
      %s29 = ssub.s32 256, 256
      %30 = vsyncadd [#allocation6], %s29
      %s31 = sshll.u32 [#allocation5], 4
      %s32 = int_to_ptr.vmem [resolvable:$true] %s31
      %37 = dma.hbm_to_vmem [thread:$0]  %s1, 256, %s32, [#allocation6], 64, 64, 4
    $region9: #{tpu_custom_call.1} parent=1 // pred_fallthru
      _
    // Predicated region
    $region10: #{tpu_custom_call.1} parent=1 // pred_check
      _
    $region11: #{tpu_custom_call.1} parent=1 // pred_check_branch
      %39 = sbr.rel (0) target = $region13
    $region12: #{tpu_custom_call.1} parent=1 // pred_region
      _
    $region13: #{tpu_custom_call.1} parent=1 // pred_fallthru
      _
    // Predicated region
    $region14: #{tpu_custom_call.1} parent=1 // pred_check
      _
    $region15: #{tpu_custom_call.1} parent=1 // pred_check_branch
      %41 = sbr.rel (0) target = $region17
    $region16: #{tpu_custom_call.1} parent=1 // pred_region
      %s43 = ssub.s32 1024, 1024
      %44 = vsyncadd [#allocation6], %s43
      %s45 = sshll.u32 [#allocation7], 4
      %s46 = int_to_ptr.vmem [resolvable:$true] %s45
      %51 = dma.hbm_to_vmem [thread:$0]  %s3, 1024, %s46, [#allocation6], 64, 64, 4
    $region17: #{tpu_custom_call.1} parent=1 // pred_fallthru
      _
    // Predicated region
    $region18: #{tpu_custom_call.1} parent=1 // pred_check
      _
    $region19: #{tpu_custom_call.1} parent=1 // pred_check_branch
      %53 = sbr.rel (0) target = $region21
    $region20: #{tpu_custom_call.1} parent=1 // pred_region
      _
    $region21: #{tpu_custom_call.1} parent=1 // pred_fallthru
      _
    // Predicated region
    $region22: #{tpu_custom_call.1} parent=1 // pred_check
      _
    $region23: #{tpu_custom_call.1} parent=1 // pred_check_branch
      %55 = sbr.rel (0) target = $region25
    $region24: #{tpu_custom_call.1} parent=1 // pred_region
      _
    $region25: #{tpu_custom_call.1} parent=1 // pred_fallthru
      _
    // Predicated region
    $region26: #{tpu_custom_call.1} parent=1 // pred_check
      _
    $region27: #{tpu_custom_call.1} parent=1 // pred_check_branch
      %57 = sbr.rel (0) target = $region29
    $region28: #{tpu_custom_call.1} parent=1 // pred_region
      %58 = dma.done [#allocation3], 256
    $region29: #{tpu_custom_call.1} parent=1 // pred_fallthru
      _
    // Predicated region
    $region30: #{tpu_custom_call.1} parent=1 // pred_check
      _
    $region31: #{tpu_custom_call.1} parent=1 // pred_check_branch
      %60 = sbr.rel (0) target = $region33
    $region32: #{tpu_custom_call.1} parent=1 // pred_region
      %61 = dma.done [#allocation6], 256
    $region33: #{tpu_custom_call.1} parent=1 // pred_fallthru
      _
    // Predicated region
    $region34: #{tpu_custom_call.1} parent=1 // pred_check
      _
    $region35: #{tpu_custom_call.1} parent=1 // pred_check_branch
      %63 = sbr.rel (0) target = $region37
    $region36: #{tpu_custom_call.1} parent=1 // pred_region
      %64 = dma.done [#allocation6], 1024
    $region37: #{tpu_custom_call.1} parent=1 // pred_fallthru
      _
    %v66 = vld [vmem:[#allocation2] sm:$0xff]
    %v67 = vld [vmem:[#allocation2 + $0x8] sm:$0xff]
    %v68 = vpack.c.bf16 %v67, %v66
    %v69 = vld [vmem:[#allocation5] sm:$0xf]
    %v70 = vld [vmem:[#allocation5 + $0x4] sm:$0xf]
    %v71 = vld [vmem:[#allocation5 + $0x8] sm:$0xf]
    %v72 = vld [vmem:[#allocation5 + $0xc] sm:$0xf]
    %v73 = vld [vmem:[%s2] sm:$0x1]
    %v75 = vlaneseq
    %v76 = vshrl.u32 %v75, 7
    %v77 = vsub.s32 0, %v76
    %v78 = vrot.slane %v73, %v77
    %v84 = vunpack.c.l.b16 %v69
    %v85 = vunpack.c.l.b16 %v70
    %v86 = vunpack.c.l.b16 %v71
    %v87 = vunpack.c.l.b16 %v72
    %v88 = vpack.c.b16 %v85, %v84
    %v89 = vpack.c.b16 %v87, %v86
    %vm92 = vcmask 261120
    %v94 = vsel %vm92, %v68, 0
    %96 = vmatprep.subr.bf16.mxu0 0
    %97 = vmatpush1.bf16.msra.mxu0 %v88
    %98 = vmatprep.subr.bf16.mxu0 0
    %99 = vmatpush1.bf16.msra.mxu0 %v89
    %100 = vmatprep.subr.bf16.mxu0 0
    %101 = vmatpush1.bf16.msra.mxu0 0
    %102 = vmatprep.subr.bf16.mxu0 0
    %103 = vmatpush1.bf16.msra.mxu0 0
    %104 = vmatprep.subr.bf16.mxu0 0
    %105 = vmatpush1.bf16.msra.mxu0 0
    %106 = vmatprep.subr.bf16.mxu0 0
    %107 = vmatpush1.bf16.msra.mxu0 0
    %108 = vmatprep.subr.bf16.mxu0 0
    %109 = vmatpush1.bf16.msra.mxu0 0
    %110 = vmatprep.subr.bf16.mxu0 0
    %111 = vmatpush1.bf16.msra.mxu0 0
    %112 = vmatprep.subr.bf16.mxu0 0
    %113 = vmatpush1.bf16.msra.mxu0 0
    %114 = vmatprep.subr.bf16.mxu0 0
    %115 = vmatpush1.bf16.msra.mxu0 0
    %116 = vmatprep.subr.bf16.mxu0 0
    %117 = vmatpush1.bf16.msra.mxu0 0
    %118 = vmatprep.subr.bf16.mxu0 0
    %119 = vmatpush1.bf16.msra.mxu0 0
    %120 = vmatprep.subr.bf16.mxu0 0
    %121 = vmatpush1.bf16.msra.mxu0 0
    %122 = vmatprep.subr.bf16.mxu0 0
    %123 = vmatpush1.bf16.msra.mxu0 0
    %124 = vmatprep.subr.bf16.mxu0 0
    %125 = vmatpush1.bf16.msra.mxu0 0
    %126 = vmatprep.subr.bf16.mxu0 0
    %127 = vmatpush1.bf16.msra.mxu0 0
    %128 = vmatprep.mubr.bf16.mxu0 0
    %129 = vmatmul.mubr.bf16.gmra.mrb[0].mxu0 %v94
    %v130 = vpop.f32.mrb[0].mxu0
    %v131 = vadd.f32 %v78, %v130
    %v132 = vpop.f32.mrb[0].mxu0
    %v133 = vpop.f32.mrb[0].mxu0
    %v134 = vadd.f32 %v78, %v133
    %v135 = vpop.f32.mrb[0].mxu0
    %136 = vdwg.mxu0
    %vm137 = vcmp.gt.f32.partialorder %v131, 0.0
    %vm138 = vcmp.gt.f32.partialorder %v134, 0.0
    %v139 = vmul.f32 %v131, 0.2
    %v140 = vmul.f32 %v134, 0.2
    %v141 = vsel %vm137, %v131, %v139
    %v142 = vsel %vm138, %v134, %v140
    %v143 = vpack.c.bf16 %v142, %v141
    %v144 = vld [vmem:[#allocation7] sm:$0xf]
    %v145 = vld [vmem:[#allocation7 + $0x4] sm:$0xf]
    %v146 = vld [vmem:[#allocation7 + $0x8] sm:$0xf]
    %v147 = vld [vmem:[#allocation7 + $0xc] sm:$0xf]
    %v148 = vld [vmem:[#allocation7 + $0x10] sm:$0xf]
    %v149 = vld [vmem:[#allocation7 + $0x14] sm:$0xf]
    %v150 = vld [vmem:[#allocation7 + $0x18] sm:$0xf]
    %v151 = vld [vmem:[#allocation7 + $0x1c] sm:$0xf]
    %v152 = vld [vmem:[#allocation7 + $0x20] sm:$0xf]
    %v153 = vld [vmem:[#allocation7 + $0x24] sm:$0xf]
    %v154 = vld [vmem:[#allocation7 + $0x28] sm:$0xf]
    %v155 = vld [vmem:[#allocation7 + $0x2c] sm:$0xf]
    %v156 = vld [vmem:[#allocation7 + $0x30] sm:$0xf]
    %v157 = vld [vmem:[#allocation7 + $0x34] sm:$0xf]
    %v158 = vld [vmem:[#allocation7 + $0x38] sm:$0xf]
    %v159 = vld [vmem:[#allocation7 + $0x3c] sm:$0xf]
    %v160 = vld [vmem:[%s4] sm:$0x1]
    %v162 = vlaneseq
    %v163 = vshrl.u32 %v162, 7
    %v164 = vsub.s32 0, %v163
    %v165 = vrot.slane %v160, %v164
    %v183 = vunpack.c.l.b16 %v144
    %v184 = vunpack.c.l.b16 %v145
    %v185 = vunpack.c.l.b16 %v146
    %v186 = vunpack.c.l.b16 %v147
    %v187 = vunpack.c.l.b16 %v148
    %v188 = vunpack.c.l.b16 %v149
    %v189 = vunpack.c.l.b16 %v150
    %v190 = vunpack.c.l.b16 %v151
    %v191 = vunpack.c.l.b16 %v152
    %v192 = vunpack.c.l.b16 %v153
    %v193 = vunpack.c.l.b16 %v154
    %v194 = vunpack.c.l.b16 %v155
    %v195 = vunpack.c.l.b16 %v156
    %v196 = vunpack.c.l.b16 %v157
    %v197 = vunpack.c.l.b16 %v158
    %v198 = vunpack.c.l.b16 %v159
    %v199 = vpack.c.b16 %v184, %v183
    %v200 = vpack.c.b16 %v186, %v185
    %v201 = vpack.c.b16 %v188, %v187
    %v202 = vpack.c.b16 %v190, %v189
    %v203 = vpack.c.b16 %v192, %v191
    %v204 = vpack.c.b16 %v194, %v193
    %v205 = vpack.c.b16 %v196, %v195
    %v206 = vpack.c.b16 %v198, %v197
    %215 = vmatprep.subr.bf16.mxu0 0
    %216 = vmatpush1.bf16.msra.mxu0 %v199
    %217 = vmatprep.subr.bf16.mxu0 0
    %218 = vmatpush1.bf16.msra.mxu0 %v200
    %219 = vmatprep.subr.bf16.mxu0 0
    %220 = vmatpush1.bf16.msra.mxu0 %v201
    %221 = vmatprep.subr.bf16.mxu0 0
    %222 = vmatpush1.bf16.msra.mxu0 %v202
    %223 = vmatprep.subr.bf16.mxu0 0
    %224 = vmatpush1.bf16.msra.mxu0 %v203
    %225 = vmatprep.subr.bf16.mxu0 0
    %226 = vmatpush1.bf16.msra.mxu0 %v204
    %227 = vmatprep.subr.bf16.mxu0 0
    %228 = vmatpush1.bf16.msra.mxu0 %v205
    %229 = vmatprep.subr.bf16.mxu0 0
    %230 = vmatpush1.bf16.msra.mxu0 %v206
    %231 = vmatprep.subr.bf16.mxu0 0
    %232 = vmatpush1.bf16.msra.mxu0 0
    %233 = vmatprep.subr.bf16.mxu0 0
    %234 = vmatpush1.bf16.msra.mxu0 0
    %235 = vmatprep.subr.bf16.mxu0 0
    %236 = vmatpush1.bf16.msra.mxu0 0
    %237 = vmatprep.subr.bf16.mxu0 0
    %238 = vmatpush1.bf16.msra.mxu0 0
    %239 = vmatprep.subr.bf16.mxu0 0
    %240 = vmatpush1.bf16.msra.mxu0 0
    %241 = vmatprep.subr.bf16.mxu0 0
    %242 = vmatpush1.bf16.msra.mxu0 0
    %243 = vmatprep.subr.bf16.mxu0 0
    %244 = vmatpush1.bf16.msra.mxu0 0
    %245 = vmatprep.subr.bf16.mxu0 0
    %246 = vmatpush1.bf16.msra.mxu0 0
    %247 = vmatprep.mubr.bf16.mxu0 0
    %248 = vmatmul.mubr.bf16.gmra.mrb[0].mxu0 %v143
    %v249 = vpop.f32.mrb[0].mxu0
    %v250 = vadd.f32 %v165, %v249
    %v251 = vpop.f32.mrb[0].mxu0
    %v252 = vpop.f32.mrb[0].mxu0
    %v253 = vadd.f32 %v165, %v252
    %v254 = vpop.f32.mrb[0].mxu0
    %255 = vdwg.mxu0
    %vm256 = vcmp.gt.f32.partialorder %v250, 0.0
    %vm257 = vcmp.gt.f32.partialorder %v253, 0.0
    %v258 = vmul.f32 %v250, 0.2
    %v259 = vmul.f32 %v253, 0.2
    %v260 = vsel %vm256, %v250, %v258
    %v261 = vsel %vm257, %v253, %v259
    %v262 = vld [vmem:[%s5] sm:$0x1]
    %v264 = vlaneseq
    %v265 = vshrl.u32 %v264, 7
    %v266 = vsub.s32 0, %v265
    %v267 = vrot.slane %v262, %v266
    %v269 = vmul.f32 %v260, %v267
    %v270 = vmul.f32 %v261, %v267
    %271 = vadd.xlane.f32.xlu0 %v269
    %v272 = vpop.xlane.xlu0 %271
    %273 = vadd.xlane.f32.xlu0 %v270
    %v274 = vpop.xlane.xlu0 %273
    %v277 = vlaneseq
    %v278 = vand.u32 %v277, 127
    %v279 = vlaneseq
    %v280 = vshrl.u32 %v279, 7
    %v281 = vsub.s32 %v278, %v280
    %v282 = vrot.slane %v272, %v281
    %v283 = vadd.s32 %v278, 4294967288
    %v284 = vlaneseq
    %v285 = vshrl.u32 %v284, 7
    %v286 = vsub.s32 %v283, %v285
    %v287 = vrot.slane %v274, %v286
    %vm288 = vcmask 130112
    %v289 = vsel %vm288, %v287, %v282
    %vm291 = vcmask 122880
    %292 = vst.msk [vmem:[#allocation8] sm:$0x1] %vm291, %v289
    // Predicated region
    $region38: #{tpu_custom_call.1} parent=1 // pred_check
      _
    $region39: #{tpu_custom_call.1} parent=1 // pred_check_branch
      %294 = sbr.rel (0) target = $region41
    $region40: #{tpu_custom_call.1} parent=1 // pred_region
      %s296 = ssub.s32 16, 16
      %297 = vsyncadd [#allocation4], %s296
      %s299 = sshll.u32 [#allocation8], 4
      %s300 = int_to_ptr.vmem [resolvable:$true] %s299
      %302 = dma.vmem_to_hbm [thread:$0]  %s300, 16, %s6, [#allocation4]
    $region41: #{tpu_custom_call.1} parent=1 // pred_fallthru
      _
    // Predicated region
    $region42: #{tpu_custom_call.1} parent=1 // pred_check
      _
    $region43: #{tpu_custom_call.1} parent=1 // pred_check_branch
      %304 = sbr.rel (0) target = $region45
    $region44: #{tpu_custom_call.1} parent=1 // pred_region
      %305 = dma.done [#allocation4], 16
    $region45: #{tpu_custom_call.1} parent=1 // pred_fallthru
      _
    %306 = vsyncpa [#allocation3], 1
    %307 = vsyncpa [#allocation6], 1
    %308 = vsyncpa [#allocation4], 1

// kernel: tpu_custom_call.1
$region0: #{tpu_custom_call.1}
  #allocation0 [shape = 'u32[]', space=smem, size = 0x4, offset = 0x4, fixed_abs, tag = 'smem constant byte address 0x4 - core index']
  #allocation1 [shape = 'u32[144,128]{1,0:T(1,128)}', space=vmem, size = 0x12000, scoped, tag = 'internal scratch']
  %s0 = inlined_call_operand.hbm [shape: f32[16,32], index: 0, kind: input, shape index: {}]
  %s1 = inlined_call_operand.hbm [shape: bf16[32,128], index: 1, kind: input, shape index: {}]
  %s2 = inlined_call_operand.vmem [shape: f32[1,128], index: 2, kind: input, shape index: {}]
  %s3 = inlined_call_operand.hbm [shape: bf16[128,128], index: 3, kind: input, shape index: {}]
  %s4 = inlined_call_operand.vmem [shape: f32[1,128], index: 4, kind: input, shape index: {}]
  %s5 = inlined_call_operand.vmem [shape: f32[1,128], index: 5, kind: input, shape index: {}]
  %s6 = inlined_call_operand.vmem [shape: f32[16,1], index: 6, kind: output, shape index: {}]
  %s7 = sld [smem:[#allocation0]]
  $region46: #{tpu_custom_call.1} parent=0
    _
  %s9 = ssub.s32 1, %s7
  %s10 = scalar_select 0, %s9, %s7
  $region1: #{tpu_custom_call.1} parent=0
    #allocation2 [shape = 'u8[8192]{0}', space=vmem, size = 0x2000, scoped, tag = 'input window, operand 0, single buffered']
    #allocation3 [shape = 's32[1]{0}', space=sflag, size = 0x4, scoped, tag = 'scoped memory for tpu_custom_call.1']
    #allocation4 [shape = 'u8[8192]{0}', space=vmem, size = 0x2000, scoped, tag = 'input window, operand 1, single buffered']
    #allocation5 [shape = 's32[1]{0}', space=sflag, size = 0x4, scoped, tag = 'scoped memory for tpu_custom_call.1']
    #allocation6 [shape = 'u8[32768]{0}', space=vmem, size = 0x8000, scoped, tag = 'input window, operand 3, single buffered']
    %11 = vsyncpa [#allocation3], 0
    %12 = vsyncpa [#allocation5], 0
    // Predicated region
    $region2: #{tpu_custom_call.1} parent=1 // pred_check
      _
    $region3: #{tpu_custom_call.1} parent=1 // pred_check_branch
      %14 = sbr.rel (0) target = $region5
    $region4: #{tpu_custom_call.1} parent=1 // pred_region
      %s16 = ssub.s32 256, 256
      %17 = vsyncadd [#allocation3], %s16
      %s18 = sshll.u32 [#allocation2], 4
      %s19 = int_to_ptr.vmem [resolvable:$true] %s18
      %24 = dma.hbm_to_vmem [thread:$0]  %s0, 256, %s19, [#allocation3], 128, 128, 8
    $region5: #{tpu_custom_call.1} parent=1 // pred_fallthru
      _
    // Predicated region
    $region6: #{tpu_custom_call.1} parent=1 // pred_check
      _
    $region7: #{tpu_custom_call.1} parent=1 // pred_check_branch
      %26 = sbr.rel (0) target = $region9
    $region8: #{tpu_custom_call.1} parent=1 // pred_region
      %s28 = ssub.s32 256, 256
      %29 = vsyncadd [#allocation5], %s28
      %s30 = sshll.u32 [#allocation4], 4
      %s31 = int_to_ptr.vmem [resolvable:$true] %s30
      %36 = dma.hbm_to_vmem [thread:$0]  %s1, 256, %s31, [#allocation5], 64, 64, 4
    $region9: #{tpu_custom_call.1} parent=1 // pred_fallthru
      _
    // Predicated region
    $region10: #{tpu_custom_call.1} parent=1 // pred_check
      _
    $region11: #{tpu_custom_call.1} parent=1 // pred_check_branch
      %38 = sbr.rel (0) target = $region13
    $region12: #{tpu_custom_call.1} parent=1 // pred_region
      _
    $region13: #{tpu_custom_call.1} parent=1 // pred_fallthru
      _
    // Predicated region
    $region14: #{tpu_custom_call.1} parent=1 // pred_check
      _
    $region15: #{tpu_custom_call.1} parent=1 // pred_check_branch
      %40 = sbr.rel (0) target = $region17
    $region16: #{tpu_custom_call.1} parent=1 // pred_region
      %s42 = ssub.s32 1024, 1024
      %43 = vsyncadd [#allocation5], %s42
      %s44 = sshll.u32 [#allocation6], 4
      %s45 = int_to_ptr.vmem [resolvable:$true] %s44
      %50 = dma.hbm_to_vmem [thread:$0]  %s3, 1024, %s45, [#allocation5], 64, 64, 4
    $region17: #{tpu_custom_call.1} parent=1 // pred_fallthru
      _
    // Predicated region
    $region18: #{tpu_custom_call.1} parent=1 // pred_check
      _
    $region19: #{tpu_custom_call.1} parent=1 // pred_check_branch
      %52 = sbr.rel (0) target = $region21
    $region20: #{tpu_custom_call.1} parent=1 // pred_region
      _
    $region21: #{tpu_custom_call.1} parent=1 // pred_fallthru
      _
    // Predicated region
    $region22: #{tpu_custom_call.1} parent=1 // pred_check
      _
    $region23: #{tpu_custom_call.1} parent=1 // pred_check_branch
      %54 = sbr.rel (0) target = $region25
    $region24: #{tpu_custom_call.1} parent=1 // pred_region
      _
    $region25: #{tpu_custom_call.1} parent=1 // pred_fallthru
      _
    // Predicated region
    $region26: #{tpu_custom_call.1} parent=1 // pred_check
      _
    $region27: #{tpu_custom_call.1} parent=1 // pred_check_branch
      %56 = sbr.rel (0) target = $region29
    $region28: #{tpu_custom_call.1} parent=1 // pred_region
      %57 = dma.done [#allocation3], 256
    $region29: #{tpu_custom_call.1} parent=1 // pred_fallthru
      _
    // Predicated region
    $region30: #{tpu_custom_call.1} parent=1 // pred_check
      _
    $region31: #{tpu_custom_call.1} parent=1 // pred_check_branch
      %59 = sbr.rel (0) target = $region33
    $region32: #{tpu_custom_call.1} parent=1 // pred_region
      %60 = dma.done [#allocation5], 256
    $region33: #{tpu_custom_call.1} parent=1 // pred_fallthru
      _
    // Predicated region
    $region34: #{tpu_custom_call.1} parent=1 // pred_check
      _
    $region35: #{tpu_custom_call.1} parent=1 // pred_check_branch
      %62 = sbr.rel (0) target = $region37
    $region36: #{tpu_custom_call.1} parent=1 // pred_region
      %63 = dma.done [#allocation5], 1024
    $region37: #{tpu_custom_call.1} parent=1 // pred_fallthru
      _
    %v65 = vld [vmem:[#allocation2] sm:$0xff]
    %v66 = vld [vmem:[#allocation2 + $0x8] sm:$0xff]
    %v67 = vpack.c.bf16 %v66, %v65
    %v68 = vld [vmem:[#allocation4] sm:$0xf]
    %v69 = vld [vmem:[#allocation4 + $0x4] sm:$0xf]
    %v70 = vld [vmem:[#allocation4 + $0x8] sm:$0xf]
    %v71 = vld [vmem:[#allocation4 + $0xc] sm:$0xf]
    %v72 = vld [vmem:[%s2] sm:$0x1]
    %v74 = vlaneseq
    %v75 = vshrl.u32 %v74, 7
    %v76 = vsub.s32 0, %v75
    %v77 = vrot.slane %v72, %v76
    %v83 = vunpack.c.l.b16 %v68
    %v84 = vunpack.c.l.b16 %v69
    %v85 = vunpack.c.l.b16 %v70
    %v86 = vunpack.c.l.b16 %v71
    %v87 = vpack.c.b16 %v84, %v83
    %v88 = vpack.c.b16 %v86, %v85
    %vm91 = vcmask 261120
    %v93 = vsel %vm91, %v67, 0
    %95 = vmatprep.subr.bf16.mxu0 0
    %96 = vmatpush1.bf16.msra.mxu0 %v87
    %97 = vmatprep.subr.bf16.mxu0 0
    %98 = vmatpush1.bf16.msra.mxu0 %v88
    %99 = vmatprep.subr.bf16.mxu0 0
    %100 = vmatpush1.bf16.msra.mxu0 0
    %101 = vmatprep.subr.bf16.mxu0 0
    %102 = vmatpush1.bf16.msra.mxu0 0
    %103 = vmatprep.subr.bf16.mxu0 0
    %104 = vmatpush1.bf16.msra.mxu0 0
    %105 = vmatprep.subr.bf16.mxu0 0
    %106 = vmatpush1.bf16.msra.mxu0 0
    %107 = vmatprep.subr.bf16.mxu0 0
    %108 = vmatpush1.bf16.msra.mxu0 0
    %109 = vmatprep.subr.bf16.mxu0 0
    %110 = vmatpush1.bf16.msra.mxu0 0
    %111 = vmatprep.subr.bf16.mxu0 0
    %112 = vmatpush1.bf16.msra.mxu0 0
    %113 = vmatprep.subr.bf16.mxu0 0
    %114 = vmatpush1.bf16.msra.mxu0 0
    %115 = vmatprep.subr.bf16.mxu0 0
    %116 = vmatpush1.bf16.msra.mxu0 0
    %117 = vmatprep.subr.bf16.mxu0 0
    %118 = vmatpush1.bf16.msra.mxu0 0
    %119 = vmatprep.subr.bf16.mxu0 0
    %120 = vmatpush1.bf16.msra.mxu0 0
    %121 = vmatprep.subr.bf16.mxu0 0
    %122 = vmatpush1.bf16.msra.mxu0 0
    %123 = vmatprep.subr.bf16.mxu0 0
    %124 = vmatpush1.bf16.msra.mxu0 0
    %125 = vmatprep.subr.bf16.mxu0 0
    %126 = vmatpush1.bf16.msra.mxu0 0
    %127 = vmatprep.mubr.bf16.mxu0 0
    %128 = vmatmul.mubr.bf16.gmra.mrb[0].mxu0 %v93
    %v129 = vpop.f32.mrb[0].mxu0
    %v130 = vadd.f32 %v77, %v129
    %v131 = vpop.f32.mrb[0].mxu0
    %v132 = vpop.f32.mrb[0].mxu0
    %v133 = vadd.f32 %v77, %v132
    %v134 = vpop.f32.mrb[0].mxu0
    %135 = vdwg.mxu0
    %vm136 = vcmp.gt.f32.partialorder %v130, 0.0
    %vm137 = vcmp.gt.f32.partialorder %v133, 0.0
    %v138 = vmul.f32 %v130, 0.2
    %v139 = vmul.f32 %v133, 0.2
    %v140 = vsel %vm136, %v130, %v138
    %v141 = vsel %vm137, %v133, %v139
    %v142 = vpack.c.bf16 %v141, %v140
    %v143 = vld [vmem:[#allocation6] sm:$0xf]
    %v144 = vld [vmem:[#allocation6 + $0x4] sm:$0xf]
    %v145 = vld [vmem:[#allocation6 + $0x8] sm:$0xf]
    %v146 = vld [vmem:[#allocation6 + $0xc] sm:$0xf]
    %v147 = vld [vmem:[#allocation6 + $0x10] sm:$0xf]
    %v148 = vld [vmem:[#allocation6 + $0x14] sm:$0xf]
    %v149 = vld [vmem:[#allocation6 + $0x18] sm:$0xf]
    %v150 = vld [vmem:[#allocation6 + $0x1c] sm:$0xf]
    %v151 = vld [vmem:[#allocation6 + $0x20] sm:$0xf]
    %v152 = vld [vmem:[#allocation6 + $0x24] sm:$0xf]
    %v153 = vld [vmem:[#allocation6 + $0x28] sm:$0xf]
    %v154 = vld [vmem:[#allocation6 + $0x2c] sm:$0xf]
    %v155 = vld [vmem:[#allocation6 + $0x30] sm:$0xf]
    %v156 = vld [vmem:[#allocation6 + $0x34] sm:$0xf]
    %v157 = vld [vmem:[#allocation6 + $0x38] sm:$0xf]
    %v158 = vld [vmem:[#allocation6 + $0x3c] sm:$0xf]
    %v159 = vld [vmem:[%s4] sm:$0x1]
    %v161 = vlaneseq
    %v162 = vshrl.u32 %v161, 7
    %v163 = vsub.s32 0, %v162
    %v164 = vrot.slane %v159, %v163
    %v182 = vunpack.c.l.b16 %v143
    %v183 = vunpack.c.l.b16 %v144
    %v184 = vunpack.c.l.b16 %v145
    %v185 = vunpack.c.l.b16 %v146
    %v186 = vunpack.c.l.b16 %v147
    %v187 = vunpack.c.l.b16 %v148
    %v188 = vunpack.c.l.b16 %v149
    %v189 = vunpack.c.l.b16 %v150
    %v190 = vunpack.c.l.b16 %v151
    %v191 = vunpack.c.l.b16 %v152
    %v192 = vunpack.c.l.b16 %v153
    %v193 = vunpack.c.l.b16 %v154
    %v194 = vunpack.c.l.b16 %v155
    %v195 = vunpack.c.l.b16 %v156
    %v196 = vunpack.c.l.b16 %v157
    %v197 = vunpack.c.l.b16 %v158
    %v198 = vpack.c.b16 %v183, %v182
    %v199 = vpack.c.b16 %v185, %v184
    %v200 = vpack.c.b16 %v187, %v186
    %v201 = vpack.c.b16 %v189, %v188
    %v202 = vpack.c.b16 %v191, %v190
    %v203 = vpack.c.b16 %v193, %v192
    %v204 = vpack.c.b16 %v195, %v194
    %v205 = vpack.c.b16 %v197, %v196
    %214 = vmatprep.subr.bf16.mxu0 0
    %215 = vmatpush1.bf16.msra.mxu0 %v198
    %216 = vmatprep.subr.bf16.mxu0 0
    %217 = vmatpush1.bf16.msra.mxu0 %v199
    %218 = vmatprep.subr.bf16.mxu0 0
    %219 = vmatpush1.bf16.msra.mxu0 %v200
    %220 = vmatprep.subr.bf16.mxu0 0
    %221 = vmatpush1.bf16.msra.mxu0 %v201
    %222 = vmatprep.subr.bf16.mxu0 0
    %223 = vmatpush1.bf16.msra.mxu0 %v202
    %224 = vmatprep.subr.bf16.mxu0 0
    %225 = vmatpush1.bf16.msra.mxu0 %v203
    %226 = vmatprep.subr.bf16.mxu0 0
    %227 = vmatpush1.bf16.msra.mxu0 %v204
    %228 = vmatprep.subr.bf16.mxu0 0
    %229 = vmatpush1.bf16.msra.mxu0 %v205
    %230 = vmatprep.subr.bf16.mxu0 0
    %231 = vmatpush1.bf16.msra.mxu0 0
    %232 = vmatprep.subr.bf16.mxu0 0
    %233 = vmatpush1.bf16.msra.mxu0 0
    %234 = vmatprep.subr.bf16.mxu0 0
    %235 = vmatpush1.bf16.msra.mxu0 0
    %236 = vmatprep.subr.bf16.mxu0 0
    %237 = vmatpush1.bf16.msra.mxu0 0
    %238 = vmatprep.subr.bf16.mxu0 0
    %239 = vmatpush1.bf16.msra.mxu0 0
    %240 = vmatprep.subr.bf16.mxu0 0
    %241 = vmatpush1.bf16.msra.mxu0 0
    %242 = vmatprep.subr.bf16.mxu0 0
    %243 = vmatpush1.bf16.msra.mxu0 0
    %244 = vmatprep.subr.bf16.mxu0 0
    %245 = vmatpush1.bf16.msra.mxu0 0
    %246 = vmatprep.mubr.bf16.mxu0 0
    %247 = vmatmul.mubr.bf16.gmra.mrb[0].mxu0 %v142
    %v248 = vpop.f32.mrb[0].mxu0
    %v249 = vadd.f32 %v164, %v248
    %v250 = vpop.f32.mrb[0].mxu0
    %v251 = vpop.f32.mrb[0].mxu0
    %v252 = vadd.f32 %v164, %v251
    %v253 = vpop.f32.mrb[0].mxu0
    %254 = vdwg.mxu0
    %vm255 = vcmp.gt.f32.partialorder %v249, 0.0
    %vm256 = vcmp.gt.f32.partialorder %v252, 0.0
    %v257 = vmul.f32 %v249, 0.2
    %v258 = vmul.f32 %v252, 0.2
    %v259 = vsel %vm255, %v249, %v257
    %v260 = vsel %vm256, %v252, %v258
    %v261 = vld [vmem:[%s5] sm:$0x1]
    %v263 = vlaneseq
    %v264 = vshrl.u32 %v263, 7
    %v265 = vsub.s32 0, %v264
    %v266 = vrot.slane %v261, %v265
    %v268 = vmul.f32 %v259, %v266
    %v269 = vmul.f32 %v260, %v266
    %270 = vadd.xlane.f32.xlu0 %v268
    %v271 = vpop.xlane.xlu0 %270
    %272 = vadd.xlane.f32.xlu0 %v269
    %v273 = vpop.xlane.xlu0 %272
    %vm274 = vcmask 7168
    %275 = vst.msk [vmem:[%s6] sm:$0xff] %vm274, %v271
    %276 = vst.msk [vmem:[%s6 + $0x8] sm:$0xff] %vm274, %v273
    // Predicated region
    $region38: #{tpu_custom_call.1} parent=1 // pred_check
      _
    $region39: #{tpu_custom_call.1} parent=1 // pred_check_branch
      %278 = sbr.rel (0) target = $region41
    $region40: #{tpu_custom_call.1} parent=1 // pred_region
      _
    $region41: #{tpu_custom_call.1} parent=1 // pred_fallthru
      _
    // Predicated region
    $region42: #{tpu_custom_call.1} parent=1 // pred_check
      _
    $region43: #{tpu_custom_call.1} parent=1 // pred_check_branch
      %280 = sbr.rel (0) target = $region45
    $region44: #{tpu_custom_call.1} parent=1 // pred_region
      _
    $region45: #{tpu_custom_call.1} parent=1 // pred_fallthru
      _
    %281 = vsyncpa [#allocation3], 1
    %282 = vsyncpa [#allocation5], 1

</llo_original>
